<compile_context>
chip_gen: v5e
topology: v5e:2x2
jax: 0.10.0
libtpu: 0.0.40
codegen_flags: <defaults>
</compile_context>

<pallas_src>
import jax
import jax.numpy as jnp
from jax.experimental import pallas as pl
from jax.experimental.pallas import tpu as pltpu

EPS = 1e-6


def _constant_style_kernel(x_ref, cmean_ref, cstd_ref, o_ref):
    # x_ref:     (TR, HW)  rows = flattened (n, c) pairs
    # cmean_ref: (TR, 1)   per-row constant mean  (f32)
    # cstd_ref:  (TR, 1)   per-row constant std   (f32)
    x = x_ref[...].astype(jnp.float32)
    hw = x.shape[-1]

    # One-pass stats along lanes: sum and sum-of-squares.
    s = jnp.sum(x, axis=-1, keepdims=True)         # (TR, 1)
    sq = jnp.sum(x * x, axis=-1, keepdims=True)    # (TR, 1)
    mu = s * (1.0 / hw)
    # Unbiased variance (torch.var default: divide by HW - 1); guard HW == 1.
    inv_nm1 = 1.0 / max(hw - 1, 1)
    var = (sq - mu * s) * inv_nm1
    inv_sig = jax.lax.rsqrt(var + EPS)             # (TR, 1) — EUP slot

    # Fold normalization + style into one per-row scale/offset (small tensors).
    scale = cstd_ref[...] * inv_sig                # (TR, 1)
    offset = cmean_ref[...] - mu * scale           # (TR, 1)

    o_ref[...] = (x * scale + offset).astype(o_ref.dtype)


def _round_up(v, m):
    return ((v + m - 1) // m) * m


def constant_style_forward(x, const_mean_vec):
    """x: (N, C, H, W) NCHW.  const_mean_vec: (2*C,) -> rows [mean; std]."""
    N, C, H, W = x.shape
    HW = H * W
    NC = N * C

    x_rows = x.reshape(NC, HW)

    # Per-channel constants broadcast to per-row (n, c) layout, done once on host
    # side of the call (no in-kernel reshape/broadcast per grid step).
    const_value = const_mean_vec.reshape(2, C).astype(jnp.float32)
    cmean_rows = jnp.tile(const_value[0], N).reshape(NC, 1)
    cstd_rows = jnp.tile(const_value[1], N).reshape(NC, 1)

    # Row-tile sizing: multiple of 8 (sublane dense), capped so a single
    # (TR, HW) tile stays ~2 MiB -> double-buffered in/out + f32 temps remain
    # well under the 32 MiB scoped VMEM on v7x (larger gens have headroom).
    itemsize = jnp.dtype(x.dtype).itemsize
    rows_by_vmem = max(8, ((2 * 1024 * 1024) // max(HW * itemsize, 1)) // 8 * 8)
    tr_cap = max(8, min(512, rows_by_vmem))

    NC_pad = _round_up(NC, 8)
    TR = 8
    for cand in range(tr_cap, 7, -8):
        if NC_pad % cand == 0:
            TR = cand
            break

    if NC_pad != NC:
        pad = NC_pad - NC
        x_rows = jnp.concatenate(
            [x_rows, jnp.zeros((pad, HW), x_rows.dtype)], axis=0)
        cmean_rows = jnp.concatenate(
            [cmean_rows, jnp.zeros((pad, 1), jnp.float32)], axis=0)
        cstd_rows = jnp.concatenate(
            [cstd_rows, jnp.zeros((pad, 1), jnp.float32)], axis=0)

    grid = (NC_pad // TR,)

    cost = pl.CostEstimate(
        flops=5 * NC_pad * HW,
        transcendentals=NC_pad,
        bytes_accessed=2 * NC_pad * HW * itemsize + 8 * NC_pad,
    )

    out_rows = pl.pallas_call(
        _constant_style_kernel,
        out_shape=jax.ShapeDtypeStruct((NC_pad, HW), x.dtype),
        grid_spec=pltpu.PrefetchScalarGridSpec(
            num_scalar_prefetch=0,
            grid=grid,
            in_specs=[
                pl.BlockSpec((TR, HW), lambda r: (r, 0)),
                pl.BlockSpec((TR, 1), lambda r: (r, 0)),
                pl.BlockSpec((TR, 1), lambda r: (r, 0)),
            ],
            out_specs=pl.BlockSpec((TR, HW), lambda r: (r, 0)),
        ),
        compiler_params=pltpu.CompilerParams(
            dimension_semantics=("parallel",),
        ),
        cost_estimate=cost,
    )(x_rows, cmean_rows, cstd_rows)

    return out_rows[:NC].reshape(N, C, H, W)


def _reference(x, const_mean_vec):
    x = x.astype(jnp.float32)
    mu = jnp.mean(x, axis=(2, 3), keepdims=True)
    var = jnp.var(x, axis=(2, 3), keepdims=True, ddof=1)
    sig = jnp.sqrt(var + EPS)
    x_normed = (x - mu) / sig
    cv = const_mean_vec.reshape(2, -1).astype(jnp.float32)
    cm = cv[0].reshape(1, -1, 1, 1)
    cs = cv[1].reshape(1, -1, 1, 1)
    return x_normed * cs + cm


if __name__ == "__main__":
    key = jax.random.PRNGKey(0)
    k_x, k_c = jax.random.split(key)

    N, C, H, W = 2, 4, 16, 16
    x = jax.random.normal(k_x, (N, C, H, W), dtype=jnp.float32)
    # Deterministic stand-in for self.const_mean (cluster center of stacked
    # [mean, std] stats): shape (2*C,).
    const_mean_vec = jax.random.normal(k_c, (2 * C,), dtype=jnp.float32)

    out = constant_style_forward(x, const_mean_vec)
    out = jax.block_until_ready(out)

    ref = _reference(x, const_mean_vec)
    assert out.shape == (N, C, H, W)
    assert jnp.allclose(out, ref, atol=1e-4, rtol=1e-4)

    print("KERNEL_OK")
</pallas_src>

<mosaic_0001>
module attributes {stable_mosaic.version = 11 : i64} {
  func.func @_constant_style_kernel(%arg0: i32, %arg1: memref<8x256xf32, #tpu.memory_space<vmem>>, %arg2: memref<8x1xf32, #tpu.memory_space<vmem>>, %arg3: memref<8x1xf32, #tpu.memory_space<vmem>>, %arg4: memref<8x256xf32, #tpu.memory_space<vmem>>) attributes {dimension_semantics = [#tpu.dimension_semantics<parallel>], iteration_bounds = array<i64: 1>, scalar_prefetch = 0 : i64, scratch_operands = 0 : i64, tpu.core_type = #tpu.core_type<tc>, window_params = [{transform_indices = @transform_0, window_bounds = array<i64: 8, 256>}, {transform_indices = @transform_1, window_bounds = array<i64: 8, 1>}, {transform_indices = @transform_2, window_bounds = array<i64: 8, 1>}, {transform_indices = @transform_3, window_bounds = array<i64: 8, 256>}]} {
    %c0 = arith.constant 0 : index
    %c0_0 = arith.constant 0 : index
    %0 = vector.load %arg1[%c0, %c0_0] : memref<8x256xf32, #tpu.memory_space<vmem>>, vector<8x256xf32>
    %cst = arith.constant dense<0.000000e+00> : vector<8xf32>
    %1 = vector.multi_reduction <add>, %0, %cst [1] : vector<8x256xf32> to vector<8xf32>
    %2 = vector.shape_cast %1 : vector<8xf32> to vector<8x1xf32>
    %3 = arith.mulf %0, %0 : vector<8x256xf32>
    %cst_1 = arith.constant dense<0.000000e+00> : vector<8xf32>
    %4 = vector.multi_reduction <add>, %3, %cst_1 [1] : vector<8x256xf32> to vector<8xf32>
    %5 = vector.shape_cast %4 : vector<8xf32> to vector<8x1xf32>
    %cst_2 = arith.constant 3.906250e-03 : f32
    %6 = vector.broadcast %cst_2 : f32 to vector<8x1xf32>
    %7 = arith.mulf %2, %6 : vector<8x1xf32>
    %8 = arith.mulf %7, %2 : vector<8x1xf32>
    %9 = arith.subf %5, %8 : vector<8x1xf32>
    %cst_3 = arith.constant 0.00392156886 : f32
    %10 = vector.broadcast %cst_3 : f32 to vector<8x1xf32>
    %11 = arith.mulf %9, %10 : vector<8x1xf32>
    %cst_4 = arith.constant 9.99999997E-7 : f32
    %12 = vector.broadcast %cst_4 : f32 to vector<8x1xf32>
    %13 = arith.addf %11, %12 : vector<8x1xf32>
    %14 = math.rsqrt %13 : vector<8x1xf32>
    %c0_5 = arith.constant 0 : index
    %c0_6 = arith.constant 0 : index
    %15 = vector.load %arg3[%c0_5, %c0_6] : memref<8x1xf32, #tpu.memory_space<vmem>>, vector<8x1xf32>
    %16 = arith.mulf %15, %14 : vector<8x1xf32>
    %c0_7 = arith.constant 0 : index
    %c0_8 = arith.constant 0 : index
    %17 = vector.load %arg2[%c0_7, %c0_8] : memref<8x1xf32, #tpu.memory_space<vmem>>, vector<8x1xf32>
    %18 = arith.mulf %7, %16 : vector<8x1xf32>
    %19 = arith.subf %17, %18 : vector<8x1xf32>
    %20 = vector.broadcast %16 : vector<8x1xf32> to vector<8x256xf32>
    %21 = arith.mulf %0, %20 : vector<8x256xf32>
    %22 = vector.broadcast %19 : vector<8x1xf32> to vector<8x256xf32>
    %23 = arith.addf %21, %22 : vector<8x256xf32>
    %c0_9 = arith.constant 0 : index
    %c0_10 = arith.constant 0 : index
    %24 = vector.load %arg4[%c0_9, %c0_10] : memref<8x256xf32, #tpu.memory_space<vmem>>, vector<8x256xf32>
    tpu.vector_store %arg4[%c0_9, %c0_10], %23 {strides = array<i32>} : memref<8x256xf32, #tpu.memory_space<vmem>>, vector<8x256xf32>,
    return
  }
  func.func @transform_0(%arg0: i32) -> (i32, i32) {
    %c0_i32 = arith.constant 0 : i32
    %c0_i32_0 = arith.constant 0 : i32
    return %arg0, %c0_i32 : i32, i32
  }
  func.func @transform_1(%arg0: i32) -> (i32, i32) {
    %c0_i32 = arith.constant 0 : i32
    %c0_i32_0 = arith.constant 0 : i32
    return %arg0, %c0_i32 : i32, i32
  }
  func.func @transform_2(%arg0: i32) -> (i32, i32) {
    %c0_i32 = arith.constant 0 : i32
    %c0_i32_0 = arith.constant 0 : i32
    return %arg0, %c0_i32 : i32, i32
  }
  func.func @transform_3(%arg0: i32) -> (i32, i32) {
    %c0_i32 = arith.constant 0 : i32
    %c0_i32_0 = arith.constant 0 : i32
    return %arg0, %c0_i32 : i32, i32
  }
}

</mosaic_0001>

<llo_original>
// kernel: tpu_custom_call.1
$region0: #{tpu_custom_call.1}
  #allocation0 [shape = 'u32[]', space=smem, size = 0x4, offset = 0x4, fixed_abs, tag = 'smem constant byte address 0x4 - core index']
  #allocation1 [shape = 'u32[72,128]{1,0:T(1,128)}', space=vmem, size = 0x9000, scoped, tag = 'internal scratch']
  %s0 = inlined_call_operand.vmem [shape: f32[8,256], index: 0, kind: input, shape index: {}]
  %s1 = inlined_call_operand.vmem [shape: f32[8,1], index: 1, kind: input, shape index: {}]
  %s2 = inlined_call_operand.vmem [shape: f32[8,1], index: 2, kind: input, shape index: {}]
  %s3 = inlined_call_operand.hbm [shape: f32[8,256], index: 3, kind: output, shape index: {}]
  %s4 = sld [smem:[#allocation0]]
  $region22: #{tpu_custom_call.1} parent=0
    _
  %s6 = ssub.s32 1, %s4
  %s7 = scalar_select 0, %s6, %s4
  $region1: #{tpu_custom_call.1} parent=0
    #allocation2 [shape = 'u8[8192]{0}', space=vmem, size = 0x2000, scoped, tag = 'output window, operand 0, single buffered']
    #allocation3 [shape = 's32[1]{0}', space=sflag, size = 0x4, scoped, tag = 'scoped memory for tpu_custom_call.1']
    %8 = vsyncpa [#allocation3], 0
    // Predicated region
    $region2: #{tpu_custom_call.1} parent=1 // pred_check
      _
    $region3: #{tpu_custom_call.1} parent=1 // pred_check_branch
      %10 = sbr.rel (0) target = $region5
    $region4: #{tpu_custom_call.1} parent=1 // pred_region
      _
    $region5: #{tpu_custom_call.1} parent=1 // pred_fallthru
      _
    // Predicated region
    $region6: #{tpu_custom_call.1} parent=1 // pred_check
      _
    $region7: #{tpu_custom_call.1} parent=1 // pred_check_branch
      %12 = sbr.rel (0) target = $region9
    $region8: #{tpu_custom_call.1} parent=1 // pred_region
      _
    $region9: #{tpu_custom_call.1} parent=1 // pred_fallthru
      _
    // Predicated region
    $region10: #{tpu_custom_call.1} parent=1 // pred_check
      _
    $region11: #{tpu_custom_call.1} parent=1 // pred_check_branch
      %14 = sbr.rel (0) target = $region13
    $region12: #{tpu_custom_call.1} parent=1 // pred_region
      _
    $region13: #{tpu_custom_call.1} parent=1 // pred_fallthru
      _
    %v15 = vld [vmem:[%s0] sm:$0xff]
    %v16 = vld [vmem:[%s0 + $0x8] sm:$0xff]
    %v17 = vadd.f32 %v15, %v16
    %18 = vadd.xlane.f32.xlu0 %v17
    %v19 = vpop.xlane.xlu0 %18
    %v20 = vmul.f32 %v15, %v15
    %v21 = vmul.f32 %v16, %v16
    %v22 = vadd.f32 %v20, %v21
    %23 = vadd.xlane.f32.xlu0 %v22
    %v24 = vpop.xlane.xlu0 %23
    %v25 = vmul.f32 %v19, 0.00390625
    %v26 = vmul.f32 %v25, %v19
    %v27 = vsub.f32 %v24, %v26
    %v28 = vmul.f32 %v27, 0.003921569
    %v29 = vadd.f32 %v28, 1e-06
    %v30 = vrsqrt.pop %v29
    %v31 = vmul.f32 %v30, %v29
    %v32 = vmul.f32 %v31, %v30
    %v33 = vmul.f32 0.5, %v32
    %v34 = vsub.f32 1.5, %v33
    %v35 = vmul.f32 %v30, %v34
    %vm36 = vweird.f32 %v29
    %vm37 = vweird.f32 %v30
    %vm38 = vmor %vm36, %vm37
    %v39 = vsel %vm38, %v30, %v35
    %v40 = vld [vmem:[%s2] sm:$0xff]
    %v41 = vmul.f32 %v40, %v39
    %v42 = vld [vmem:[%s1] sm:$0xff]
    %v43 = vmul.f32 %v25, %v41
    %v44 = vsub.f32 %v42, %v43
    %46 = vset.pattern.permute.xlu0 0
    %47 = vperm.xlu0 %46, %v41
    %v48 = vpop.permute.xlu0 %47
    %v50 = vmul.f32 %v15, %v48
    %v51 = vmul.f32 %v16, %v48
    %53 = vset.pattern.permute.xlu0 0
    %54 = vperm.xlu0 %53, %v44
    %v55 = vpop.permute.xlu0 %54
    %v57 = vadd.f32 %v50, %v55
    %v58 = vadd.f32 %v51, %v55
    %59 = vst [vmem:[#allocation2] sm:$0xff] %v57
    %60 = vst [vmem:[#allocation2 + $0x8] sm:$0xff] %v58
    // Predicated region
    $region14: #{tpu_custom_call.1} parent=1 // pred_check
      _
    $region15: #{tpu_custom_call.1} parent=1 // pred_check_branch
      %62 = sbr.rel (0) target = $region17
    $region16: #{tpu_custom_call.1} parent=1 // pred_region
      %64 = vsyncadd [#allocation3], 0
      %s66 = sshll.u32 [#allocation2], 4
      %s67 = int_to_ptr.vmem [resolvable:$true] %s66
      %s68 = sshll.u32 %s3, 4
      %s69 = int_to_ptr.hbm [resolvable:$true] %s68
      %71 = dma.vmem_to_hbm [thread:$0]  %s67, 256, %s69, [#allocation3]
    $region17: #{tpu_custom_call.1} parent=1 // pred_fallthru
      _
    // Predicated region
    $region18: #{tpu_custom_call.1} parent=1 // pred_check
      _
    $region19: #{tpu_custom_call.1} parent=1 // pred_check_branch
      %73 = sbr.rel (0) target = $region21
    $region20: #{tpu_custom_call.1} parent=1 // pred_region
      %75 = dma.done [#allocation3], 256
    $region21: #{tpu_custom_call.1} parent=1 // pred_fallthru
      _
    %76 = vsyncpa [#allocation3], 1

</llo_original>
